<compile_context>
chip_gen: v5e
topology: v5e:2x2
jax: 0.10.0
libtpu: 0.0.40
codegen_flags: <defaults>
</compile_context>

<pallas_src>
import jax
import jax.numpy as jnp
from jax.experimental import pallas as pl
from jax.experimental.pallas import tpu as pltpu

_LANE = 128
_SUBLANE = 8
_DEFAULT_TILE_ROWS = 512
# Keep double-buffered in+out tiles comfortably under v7x's 32 MiB default
# scoped VMEM (and far under 64 MiB physical).
_VMEM_BUDGET_BYTES = 24 * 1024 * 1024


def _copy_kernel(*refs):
    # First half of refs are inputs, second half are the matching outputs.
    # Straight full-tile assignments: no per-row loops, no extra elementwise
    # work, so only the DMA / store slot limits throughput.
    n = len(refs) // 2
    for x_ref, o_ref in zip(refs[:n], refs[n:]):
        o_ref[...] = x_ref[...]


def _kernel_view_shape(shape):
    """2D shape presented to the kernel.

    Prefer a lane-dense layout (last dim a multiple of 128) so stores lower to
    full-width vst instead of masked partial stores.  Reshape of a contiguous
    row-major array is metadata-only.
    """
    b, h = shape
    if h % _LANE == 0:
        return (b, h)
    total = b * h
    if total % _LANE == 0:
        return (total // _LANE, _LANE)
    # Tiny / ragged arrays: keep the original shape; the whole array is one
    # block (full-array block sidesteps the (8,128) divisibility rule).
    return (b, h)


def _choose_tile_rows(rows, bytes_per_row_all_arrays):
    """Pick the row-tile so 2 input + 2 output double buffers fit the budget."""
    if rows <= _DEFAULT_TILE_ROWS:
        # Single block along rows (block dim equals the full array dim).
        return rows
    tm = _DEFAULT_TILE_ROWS
    while tm > _SUBLANE and 4 * tm * bytes_per_row_all_arrays > _VMEM_BUDGET_BYTES:
        tm //= 2
    return max(tm, _SUBLANE)


def _fused_identity_call(xs):
    """One pallas_call copying every array in `xs` (same shape & dtype)."""
    shape = xs[0].shape
    dtype = xs[0].dtype
    kshape = _kernel_view_shape(shape)
    rows, cols = kshape
    itemsize = jnp.dtype(dtype).itemsize
    bytes_per_row_all = len(xs) * cols * itemsize
    tm = _choose_tile_rows(rows, bytes_per_row_all)
    grid = (pl.cdiv(rows, tm),)

    spec = pl.BlockSpec((tm, cols), lambda i: (i, 0))
    xs_k = [x.reshape(kshape) for x in xs]

    out = pl.pallas_call(
        _copy_kernel,
        out_shape=tuple(jax.ShapeDtypeStruct(kshape, dtype) for _ in xs),
        grid=grid,
        in_specs=[spec] * len(xs),
        out_specs=[spec] * len(xs),
        compiler_params=pltpu.CompilerParams(
            # Independent row tiles: megacore-shardable on v7x, no-op on v5e/v6e.
            dimension_semantics=("parallel",),
        ),
    )(*xs_k)

    outs = list(out) if isinstance(out, (tuple, list)) else [out]
    return [o.reshape(shape) for o in outs]


def invariant_preference_forward(*embed):
    """Pallas forward for InvariantPreferenceLearner.

    Accepts one or more (batch, hidden) embedding arrays and returns them
    unchanged (identity), routed through fused, batch-tiled, pipelined Pallas
    copy kernels.
    """
    assert len(embed) > 0, "forward(*embed) requires at least one embedding"
    for x in embed:
        assert x.ndim == 2, "expected (batch, hidden) embeddings"

    # Group same-shape/dtype embeddings so each group is a single fused call.
    groups = {}
    for idx, x in enumerate(embed):
        key = (tuple(x.shape), str(jnp.dtype(x.dtype)))
        groups.setdefault(key, []).append(idx)

    results = [None] * len(embed)
    for idxs in groups.values():
        outs = _fused_identity_call([embed[i] for i in idxs])
        for i, o in zip(idxs, outs):
            results[i] = o

    return results[0] if len(results) == 1 else tuple(results)


def get_L2_reg() -> jnp.ndarray:
    # Module has no parameters -> L2 regularizer over its parameters is 0.
    return jnp.zeros((), dtype=jnp.float32)


def get_L1_reg() -> jnp.ndarray:
    # Module has no parameters -> L1 regularizer over its parameters is 0.
    return jnp.zeros((), dtype=jnp.float32)


if __name__ == "__main__":
    key = jax.random.PRNGKey(0)
    k1, k2, k3 = jax.random.split(key, 3)

    # Small shapes consistent with the module (forward takes *embed varargs):
    #   two (batch=2, hidden=32) embeddings -> fused into one call (narrow,
    #   full-array block), plus one (batch=8, hidden=128) embedding that
    #   exercises the lane-dense tiled path.
    embed_a = jax.random.normal(k1, (2, 32), dtype=jnp.float32)
    embed_b = jax.random.normal(k2, (2, 32), dtype=jnp.float32)
    embed_c = jax.random.normal(k3, (8, 128), dtype=jnp.float32)

    out_a, out_b, out_c = invariant_preference_forward(embed_a, embed_b, embed_c)
    jax.block_until_ready((out_a, out_b, out_c))

    # Sanity: identity semantics and zero regularizers (no parameters).
    assert jnp.allclose(out_a, embed_a)
    assert jnp.allclose(out_b, embed_b)
    assert jnp.allclose(out_c, embed_c)
    assert float(get_L2_reg()) == 0.0 and float(get_L1_reg()) == 0.0

    print("KERNEL_OK")
</pallas_src>

<mosaic_0001>
module attributes {stable_mosaic.version = 11 : i64} {
  func.func @_copy_kernel(%arg0: i32, %arg1: memref<2x32xf32, #tpu.memory_space<vmem>>, %arg2: memref<2x32xf32, #tpu.memory_space<vmem>>, %arg3: memref<2x32xf32, #tpu.memory_space<vmem>>, %arg4: memref<2x32xf32, #tpu.memory_space<vmem>>) attributes {dimension_semantics = [#tpu.dimension_semantics<parallel>], iteration_bounds = array<i64: 1>, scalar_prefetch = 0 : i64, scratch_operands = 0 : i64, tpu.core_type = #tpu.core_type<tc>, window_params = [{transform_indices = @transform_0, window_bounds = array<i64: 2, 32>}, {transform_indices = @transform_1, window_bounds = array<i64: 2, 32>}, {transform_indices = @transform_2, window_bounds = array<i64: 2, 32>}, {transform_indices = @transform_3, window_bounds = array<i64: 2, 32>}]} {
    %c0 = arith.constant 0 : index
    %c0_0 = arith.constant 0 : index
    %0 = vector.load %arg1[%c0, %c0_0] : memref<2x32xf32, #tpu.memory_space<vmem>>, vector<2x32xf32>
    %c0_1 = arith.constant 0 : index
    %c0_2 = arith.constant 0 : index
    %1 = vector.load %arg3[%c0_1, %c0_2] : memref<2x32xf32, #tpu.memory_space<vmem>>, vector<2x32xf32>
    tpu.vector_store %arg3[%c0_1, %c0_2], %0 {strides = array<i32>} : memref<2x32xf32, #tpu.memory_space<vmem>>, vector<2x32xf32>,
    %c0_3 = arith.constant 0 : index
    %c0_4 = arith.constant 0 : index
    %2 = vector.load %arg2[%c0_3, %c0_4] : memref<2x32xf32, #tpu.memory_space<vmem>>, vector<2x32xf32>
    %c0_5 = arith.constant 0 : index
    %c0_6 = arith.constant 0 : index
    %3 = vector.load %arg4[%c0_5, %c0_6] : memref<2x32xf32, #tpu.memory_space<vmem>>, vector<2x32xf32>
    tpu.vector_store %arg4[%c0_5, %c0_6], %2 {strides = array<i32>} : memref<2x32xf32, #tpu.memory_space<vmem>>, vector<2x32xf32>,
    return
  }
  func.func @transform_0(%arg0: i32) -> (i32, i32) {
    %c0_i32 = arith.constant 0 : i32
    %c0_i32_0 = arith.constant 0 : i32
    return %arg0, %c0_i32 : i32, i32
  }
  func.func @transform_1(%arg0: i32) -> (i32, i32) {
    %c0_i32 = arith.constant 0 : i32
    %c0_i32_0 = arith.constant 0 : i32
    return %arg0, %c0_i32 : i32, i32
  }
  func.func @transform_2(%arg0: i32) -> (i32, i32) {
    %c0_i32 = arith.constant 0 : i32
    %c0_i32_0 = arith.constant 0 : i32
    return %arg0, %c0_i32 : i32, i32
  }
  func.func @transform_3(%arg0: i32) -> (i32, i32) {
    %c0_i32 = arith.constant 0 : i32
    %c0_i32_0 = arith.constant 0 : i32
    return %arg0, %c0_i32 : i32, i32
  }
}

</mosaic_0001>

<llo_original>
// kernel: tpu_custom_call.1
$region0: #{tpu_custom_call.1}
  #allocation0 [shape = 'u32[]', space=smem, size = 0x4, offset = 0x4, fixed_abs, tag = 'smem constant byte address 0x4 - core index']
  #allocation1 [shape = 'u32[72,128]{1,0:T(1,128)}', space=vmem, size = 0x9000, scoped, tag = 'internal scratch']
  %s0 = inlined_call_operand.hbm [shape: f32[2,32], index: 0, kind: input, shape index: {}]
  %s1 = inlined_call_operand.hbm [shape: f32[2,32], index: 1, kind: input, shape index: {}]
  %s2 = inlined_call_operand.hbm [shape: f32[2,32], index: 2, kind: output, shape index: {0}]
  %s3 = inlined_call_operand.hbm [shape: f32[2,32], index: 3, kind: output, shape index: {1}]
  %4 = xla_tuple %s2, %s3
  %s5 = sld [smem:[#allocation0]]
  $region34: #{tpu_custom_call.1} parent=0
    _
  %s7 = ssub.s32 1, %s5
  %s8 = scalar_select 0, %s7, %s5
  $region1: #{tpu_custom_call.1} parent=0
    #allocation2 [shape = 'u8[1024]{0}', space=vmem, size = 0x400, scoped, tag = 'input window, operand 0, single buffered']
    #allocation3 [shape = 's32[1]{0}', space=sflag, size = 0x4, scoped, tag = 'scoped memory for tpu_custom_call.1']
    #allocation4 [shape = 's32[1]{0}', space=sflag, size = 0x4, scoped, tag = 'scoped memory for tpu_custom_call.1']
    #allocation5 [shape = 'u8[1024]{0}', space=vmem, size = 0x400, scoped, tag = 'input window, operand 1, single buffered']
    #allocation6 [shape = 's32[1]{0}', space=sflag, size = 0x4, scoped, tag = 'scoped memory for tpu_custom_call.1']
    #allocation7 [shape = 'u8[1024]{0}', space=vmem, size = 0x400, scoped, tag = 'output window, operand 0, single buffered']
    #allocation8 [shape = 'u8[1024]{0}', space=vmem, size = 0x400, scoped, tag = 'output window, operand 1, single buffered']
    #allocation9 [shape = 's32[1]{0}', space=sflag, size = 0x4, scoped, tag = 'scoped memory for tpu_custom_call.1']
    %9 = vsyncpa [#allocation3], 0
    %10 = vsyncpa [#allocation6], 0
    %11 = vsyncpa [#allocation4], 0
    %12 = vsyncpa [#allocation9], 0
    // Predicated region
    $region2: #{tpu_custom_call.1} parent=1 // pred_check
      _
    $region3: #{tpu_custom_call.1} parent=1 // pred_check_branch
      %14 = sbr.rel (0) target = $region5
    $region4: #{tpu_custom_call.1} parent=1 // pred_region
      %16 = vsyncadd [#allocation3], 0
      %s18 = sshll.u32 %s0, 4
      %s19 = int_to_ptr.hbm [resolvable:$true] %s18
      %s20 = sshll.u32 [#allocation2], 4
      %s21 = int_to_ptr.vmem [resolvable:$true] %s20
      %23 = dma.hbm_to_vmem [thread:$0]  %s19, 32, %s21, [#allocation3]
    $region5: #{tpu_custom_call.1} parent=1 // pred_fallthru
      _
    // Predicated region
    $region6: #{tpu_custom_call.1} parent=1 // pred_check
      _
    $region7: #{tpu_custom_call.1} parent=1 // pred_check_branch
      %25 = sbr.rel (0) target = $region9
    $region8: #{tpu_custom_call.1} parent=1 // pred_region
      %27 = vsyncadd [#allocation6], 0
      %s29 = sshll.u32 %s1, 4
      %s30 = int_to_ptr.hbm [resolvable:$true] %s29
      %s31 = sshll.u32 [#allocation5], 4
      %s32 = int_to_ptr.vmem [resolvable:$true] %s31
      %34 = dma.hbm_to_vmem [thread:$0]  %s30, 32, %s32, [#allocation6]
    $region9: #{tpu_custom_call.1} parent=1 // pred_fallthru
      _
    // Predicated region
    $region10: #{tpu_custom_call.1} parent=1 // pred_check
      _
    $region11: #{tpu_custom_call.1} parent=1 // pred_check_branch
      %36 = sbr.rel (0) target = $region13
    $region12: #{tpu_custom_call.1} parent=1 // pred_region
      %38 = dma.done [#allocation3], 32
    $region13: #{tpu_custom_call.1} parent=1 // pred_fallthru
      _
    // Predicated region
    $region14: #{tpu_custom_call.1} parent=1 // pred_check
      _
    $region15: #{tpu_custom_call.1} parent=1 // pred_check_branch
      %40 = sbr.rel (0) target = $region17
    $region16: #{tpu_custom_call.1} parent=1 // pred_region
      %42 = dma.done [#allocation6], 32
    $region17: #{tpu_custom_call.1} parent=1 // pred_fallthru
      _
    %v43 = vld [vmem:[#allocation2] sm:$0x3]
    %vm44 = vcmask 254976
    %45 = vst.msk [vmem:[#allocation7] sm:$0x3] %vm44, %v43
    %v46 = vld [vmem:[#allocation5] sm:$0x3]
    %47 = vst.msk [vmem:[#allocation8] sm:$0x3] %vm44, %v46
    // Predicated region
    $region18: #{tpu_custom_call.1} parent=1 // pred_check
      _
    $region19: #{tpu_custom_call.1} parent=1 // pred_check_branch
      %49 = sbr.rel (0) target = $region21
    $region20: #{tpu_custom_call.1} parent=1 // pred_region
      %51 = vsyncadd [#allocation4], 0
      %s53 = sshll.u32 [#allocation7], 4
      %s54 = int_to_ptr.vmem [resolvable:$true] %s53
      %s55 = sshll.u32 %s2, 4
      %s56 = int_to_ptr.hbm [resolvable:$true] %s55
      %58 = dma.vmem_to_hbm [thread:$0]  %s54, 32, %s56, [#allocation4]
    $region21: #{tpu_custom_call.1} parent=1 // pred_fallthru
      _
    // Predicated region
    $region22: #{tpu_custom_call.1} parent=1 // pred_check
      _
    $region23: #{tpu_custom_call.1} parent=1 // pred_check_branch
      %60 = sbr.rel (0) target = $region25
    $region24: #{tpu_custom_call.1} parent=1 // pred_region
      %62 = vsyncadd [#allocation9], 0
      %s64 = sshll.u32 [#allocation8], 4
      %s65 = int_to_ptr.vmem [resolvable:$true] %s64
      %s66 = sshll.u32 %s3, 4
      %s67 = int_to_ptr.hbm [resolvable:$true] %s66
      %69 = dma.vmem_to_hbm [thread:$0]  %s65, 32, %s67, [#allocation9]
    $region25: #{tpu_custom_call.1} parent=1 // pred_fallthru
      _
    // Predicated region
    $region26: #{tpu_custom_call.1} parent=1 // pred_check
      _
    $region27: #{tpu_custom_call.1} parent=1 // pred_check_branch
      %71 = sbr.rel (0) target = $region29
    $region28: #{tpu_custom_call.1} parent=1 // pred_region
      %73 = dma.done [#allocation4], 32
    $region29: #{tpu_custom_call.1} parent=1 // pred_fallthru
      _
    // Predicated region
    $region30: #{tpu_custom_call.1} parent=1 // pred_check
      _
    $region31: #{tpu_custom_call.1} parent=1 // pred_check_branch
      %75 = sbr.rel (0) target = $region33
    $region32: #{tpu_custom_call.1} parent=1 // pred_region
      %77 = dma.done [#allocation9], 32
    $region33: #{tpu_custom_call.1} parent=1 // pred_fallthru
      _
    %78 = vsyncpa [#allocation3], 1
    %79 = vsyncpa [#allocation6], 1
    %80 = vsyncpa [#allocation4], 1
    %81 = vsyncpa [#allocation9], 1

</llo_original>
